<compile_context>
chip_gen: v6e
topology: v6e:2x2x1
jax: 0.10.0
libtpu: 0.0.40
codegen_flags: <defaults>
</compile_context>

<pallas_src>
import jax
import jax.numpy as jnp
from jax.experimental import pallas as pl
from jax.experimental.pallas import tpu as pltpu


def _round_up(x, m):
    return ((x + m - 1) // m) * m


def _silu(y):
    # y * sigmoid(y); keep exp and the divide on the EUP slot.
    return y * pl.reciprocal(1.0 + jnp.exp(-y), approx=True)


def _mm_bias_silu_kernel(p_ref, w_ref, b_ref, o_ref):
    """Single K-chunk path; grid = (m_tiles, cout_tiles).  No accumulator scratch.

    p_ref: (tM, tK) bf16 im2col patch tile
    w_ref: (tK, tC) bf16 BN-folded weight tile
    b_ref: (1,  tC) f32 folded BN bias
    o_ref: (tM, tC) f32 output tile (lane-dense, tC multiple of 128)
    """
    y = jnp.dot(p_ref[...], w_ref[...], preferred_element_type=jnp.float32) + b_ref[...]
    o_ref[...] = _silu(y).astype(o_ref.dtype)


def _mm_bias_silu_acc_kernel(p_ref, w_ref, b_ref, o_ref, acc_ref):
    """Chunked-reduction path; grid = (m_tiles, cout_tiles, k_chunks), nk >= 2.

    acc_ref: (tM, tC) f32 VMEM scratch, resident across the kk axis.
    The last chunk never writes acc_ref: the final partial is folded directly into
    the epilogue (saves a full tM x tC f32 vst + vld per output tile).
    """
    kk = pl.program_id(2)
    nk = pl.num_programs(2)

    partial = jnp.dot(p_ref[...], w_ref[...], preferred_element_type=jnp.float32)

    @pl.when(kk == 0)
    def _():
        acc_ref[...] = partial                      # init with first chunk

    @pl.when(jnp.logical_and(kk > 0, kk < nk - 1))
    def _():
        acc_ref[...] += partial                     # middle chunks

    @pl.when(kk == nk - 1)
    def _():
        y = acc_ref[...] + partial + b_ref[...]     # fold last partial + BN bias
        o_ref[...] = _silu(y).astype(o_ref.dtype)


def conv_bn_silu(x_nchw, weight, bn_gamma, bn_beta, bn_mean, bn_var,
                 *, k=3, s=1, g=1, d=1, eps=1e-5):
    """x_nchw: (N, Cin, H, W) f32.  weight: (Cout, Cin, k, k) f32."""
    if s != 1 or g != 1 or d != 1 or (k % 2) != 1:
        # Guard instead of silently producing wrong results for other configs.
        raise NotImplementedError("Pallas Conv kernel supports odd k, s=1, g=1, d=1")

    N, Cin, H, W = x_nchw.shape
    Cout = weight.shape[0]
    pad = k // 2  # autopad(k, None, 1)

    M = N * H * W
    Kc = k * k * Cin

    # ---- tile selection ----
    tM = 512 if M >= 512 else _round_up(M, 8)       # spatial-row tile (sublane-aligned)
    Mp = _round_up(M, tM)
    tC = min(_round_up(Cout, 128), 512)             # lane-dense; nc == 1 for Cout <= 512
    Coutp = _round_up(Cout, tC)
    Kcp = _round_up(Kc, 128)                        # lane-dense contraction, even for tiny Cin
    if Kcp <= 1024:
        tK = Kcp                                    # single chunk (no accumulator at all)
    else:
        tK = 512                                    # chunked reduction
        Kcp = _round_up(Kc, tK)
    nm, nc, nk = Mp // tM, Coutp // tC, Kcp // tK

    # ---- wrapper glue: layout, pad, im2col (built once, in bf16), BN folding ----
    x = jnp.transpose(x_nchw, (0, 2, 3, 1)).astype(jnp.bfloat16)          # NHWC, bf16 first
    x_pad = jnp.pad(x, ((0, 0), (pad, pad), (pad, pad), (0, 0)))          # zero-pad (bias-free conv)

    # im2col: (N, H, W, Kcp) with (dh, dw, ci) ordering, ci fastest; Kc padding folded in.
    taps = [x_pad[:, dh:dh + H, dw:dw + W, :] for dh in range(k) for dw in range(k)]
    if Kcp > Kc:
        taps.append(jnp.zeros((N, H, W, Kcp - Kc), jnp.bfloat16))
    patches = jnp.concatenate(taps, axis=-1).reshape(M, Kcp)
    if Mp > M:
        patches = jnp.pad(patches, ((0, Mp - M), (0, 0)))

    # Fold BN (inference form) into the conv weights; bias-only epilogue.
    scale = bn_gamma / jnp.sqrt(bn_var + eps)                              # (Cout,)
    bias = bn_beta - bn_mean * scale                                       # (Cout,)
    w2 = jnp.transpose(weight, (2, 3, 1, 0)).reshape(Kc, Cout) * scale[None, :]
    w2 = jnp.pad(w2, ((0, Kcp - Kc), (0, Coutp - Cout))).astype(jnp.bfloat16)
    bias2 = jnp.pad(bias, (0, Coutp - Cout)).reshape(1, Coutp).astype(jnp.float32)

    # ---- kernel launch ----
    if nk == 1:
        out = pl.pallas_call(
            _mm_bias_silu_kernel,
            out_shape=jax.ShapeDtypeStruct((Mp, Coutp), jnp.float32),
            grid_spec=pltpu.PrefetchScalarGridSpec(
                num_scalar_prefetch=0,
                grid=(nm, nc),
                in_specs=[
                    pl.BlockSpec((tM, tK), lambda m, c: (m, 0)),
                    pl.BlockSpec((tK, tC), lambda m, c: (0, c)),
                    pl.BlockSpec((1, tC), lambda m, c: (0, c)),
                ],
                out_specs=pl.BlockSpec((tM, tC), lambda m, c: (m, c)),
            ),
            compiler_params=pltpu.CompilerParams(
                dimension_semantics=("parallel", "parallel")),
        )(patches, w2, bias2)
    else:
        out = pl.pallas_call(
            _mm_bias_silu_acc_kernel,
            out_shape=jax.ShapeDtypeStruct((Mp, Coutp), jnp.float32),
            grid_spec=pltpu.PrefetchScalarGridSpec(
                num_scalar_prefetch=0,
                grid=(nm, nc, nk),                   # reduction axis last
                in_specs=[
                    pl.BlockSpec((tM, tK), lambda m, c, kk: (m, kk)),
                    pl.BlockSpec((tK, tC), lambda m, c, kk: (kk, c)),
                    pl.BlockSpec((1, tC), lambda m, c, kk: (0, c)),
                ],
                out_specs=pl.BlockSpec((tM, tC), lambda m, c, kk: (m, c)),
                scratch_shapes=[pltpu.VMEM((tM, tC), jnp.float32)],
            ),
            compiler_params=pltpu.CompilerParams(
                dimension_semantics=("parallel", "parallel", "arbitrary")),
        )(patches, w2, bias2)

    out = out[:M, :Cout].reshape(N, H, W, Cout)
    return jnp.transpose(out, (0, 3, 1, 2))          # back to NCHW


def _reference(x_nchw, weight, gamma, beta, mean, var, eps=1e-5):
    y = jax.lax.conv_general_dilated(
        x_nchw, weight, window_strides=(1, 1), padding="SAME",
        dimension_numbers=("NCHW", "OIHW", "NCHW"))
    scale = gamma / jnp.sqrt(var + eps)
    bias = beta - mean * scale
    y = y * scale[None, :, None, None] + bias[None, :, None, None]
    return y * jax.nn.sigmoid(y)


def _make_inputs(key, n, c1, c2, h, w, kk):
    k_x, k_w, k_g, k_b, k_m, k_v = jax.random.split(key, 6)
    x = jax.random.normal(k_x, (n, c1, h, w), jnp.float32)
    weight = jax.random.normal(k_w, (c2, c1, kk, kk), jnp.float32) * 0.1
    gamma = jax.random.normal(k_g, (c2,), jnp.float32) * 0.1 + 1.0
    beta = jax.random.normal(k_b, (c2,), jnp.float32) * 0.1
    mean = jax.random.normal(k_m, (c2,), jnp.float32) * 0.1
    var = jnp.abs(jax.random.normal(k_v, (c2,), jnp.float32)) * 0.1 + 0.5
    return x, weight, gamma, beta, mean, var


if __name__ == "__main__":
    key = jax.random.PRNGKey(0)
    key1, key2 = jax.random.split(key)

    # Case 1 (module-default sizes): single K-chunk path (no accumulator).
    N, C1, C2, H, W, K = 2, 4, 8, 16, 16, 3
    x, weight, gamma, beta, mean, var = _make_inputs(key1, N, C1, C2, H, W, K)
    out = conv_bn_silu(x, weight, gamma, beta, mean, var, k=K)
    out = jax.block_until_ready(out)
    ref = _reference(x, weight, gamma, beta, mean, var)
    assert out.shape == (N, C2, H, W)
    # bf16 MXU operands with f32 accumulation -> loosened tolerance vs f32 reference.
    assert jnp.allclose(out, ref, rtol=3e-2, atol=3e-2), "mismatch vs JAX reference (case 1)"

    # Case 2 (wide-Cin layer): exercises the chunked-reduction kernel (nk > 1).
    N2, C1b, C2b, H2, W2 = 1, 128, 64, 8, 8
    x2, w2_, g2, b2, m2, v2 = _make_inputs(key2, N2, C1b, C2b, H2, W2, K)
    out2 = conv_bn_silu(x2, w2_, g2, b2, m2, v2, k=K)
    out2 = jax.block_until_ready(out2)
    ref2 = _reference(x2, w2_, g2, b2, m2, v2)
    assert out2.shape == (N2, C2b, H2, W2)
    assert jnp.allclose(out2, ref2, rtol=5e-2, atol=5e-2), "mismatch vs JAX reference (case 2)"

    print("KERNEL_OK")
</pallas_src>

<mosaic_0001>
module attributes {stable_mosaic.version = 11 : i64} {
  func.func @_mm_bias_silu_kernel(%arg0: i32, %arg1: i32, %arg2: memref<512x128xbf16, #tpu.memory_space<vmem>>, %arg3: memref<128x128xbf16, #tpu.memory_space<vmem>>, %arg4: memref<1x128xf32, #tpu.memory_space<vmem>>, %arg5: memref<512x128xf32, #tpu.memory_space<vmem>>) attributes {dimension_semantics = [#tpu.dimension_semantics<parallel>, #tpu.dimension_semantics<parallel>], iteration_bounds = array<i64: 1, 1>, scalar_prefetch = 0 : i64, scratch_operands = 0 : i64, tpu.core_type = #tpu.core_type<tc>, window_params = [{transform_indices = @transform_0, window_bounds = array<i64: 512, 128>}, {transform_indices = @transform_1, window_bounds = array<i64: 128, 128>}, {transform_indices = @transform_2, window_bounds = array<i64: 1, 128>}, {transform_indices = @transform_3, window_bounds = array<i64: 512, 128>}]} {
    %c0 = arith.constant 0 : index
    %c0_0 = arith.constant 0 : index
    %0 = vector.load %arg2[%c0, %c0_0] : memref<512x128xbf16, #tpu.memory_space<vmem>>, vector<512x128xbf16>
    %c0_1 = arith.constant 0 : index
    %c0_2 = arith.constant 0 : index
    %1 = vector.load %arg3[%c0_1, %c0_2] : memref<128x128xbf16, #tpu.memory_space<vmem>>, vector<128x128xbf16>
    %cst = arith.constant dense<0.000000e+00> : vector<512x128xf32>
    %2 = tpu.matmul %0, %1, %cst {dimension_numbers = #tpu.dot_dimension_numbers<[1], [0], [0], [1], [0, 0, 1, 1], [], []>} : vector<512x128xbf16>, vector<128x128xbf16>, vector<512x128xf32> -> vector<512x128xf32>
    %c0_3 = arith.constant 0 : index
    %c0_4 = arith.constant 0 : index
    %3 = vector.load %arg4[%c0_3, %c0_4] : memref<1x128xf32, #tpu.memory_space<vmem>>, vector<1x128xf32>
    %4 = vector.broadcast %3 : vector<1x128xf32> to vector<512x128xf32>
    %5 = arith.addf %2, %4 : vector<512x128xf32>
    %cst_5 = arith.constant 0.000000e+00 : f32
    %6 = vector.broadcast %cst_5 : f32 to vector<512x128xf32>
    %7 = arith.subf %6, %5 : vector<512x128xf32>
    %8 = math.exp %7 : vector<512x128xf32>
    %cst_6 = arith.constant 1.000000e+00 : f32
    %9 = vector.broadcast %cst_6 : f32 to vector<512x128xf32>
    %10 = arith.addf %9, %8 : vector<512x128xf32>
    %11 = tpu.reciprocal %10 {approx = true} : vector<512x128xf32> -> vector<512x128xf32>
    %12 = arith.mulf %5, %11 : vector<512x128xf32>
    %c0_7 = arith.constant 0 : index
    %c0_8 = arith.constant 0 : index
    %13 = vector.load %arg5[%c0_7, %c0_8] : memref<512x128xf32, #tpu.memory_space<vmem>>, vector<512x128xf32>
    tpu.vector_store %arg5[%c0_7, %c0_8], %12 {strides = array<i32>} : memref<512x128xf32, #tpu.memory_space<vmem>>, vector<512x128xf32>,
    return
  }
  func.func @transform_0(%arg0: i32, %arg1: i32) -> (i32, i32) {
    %c0_i32 = arith.constant 0 : i32
    %c0_i32_0 = arith.constant 0 : i32
    return %arg0, %c0_i32 : i32, i32
  }
  func.func @transform_1(%arg0: i32, %arg1: i32) -> (i32, i32) {
    %c0_i32 = arith.constant 0 : i32
    %c0_i32_0 = arith.constant 0 : i32
    return %c0_i32, %arg1 : i32, i32
  }
  func.func @transform_2(%arg0: i32, %arg1: i32) -> (i32, i32) {
    %c0_i32 = arith.constant 0 : i32
    %c0_i32_0 = arith.constant 0 : i32
    return %c0_i32, %arg1 : i32, i32
  }
  func.func @transform_3(%arg0: i32, %arg1: i32) -> (i32, i32) {
    %c0_i32 = arith.constant 0 : i32
    return %arg0, %arg1 : i32, i32
  }
}

</mosaic_0001>

<llo_original>
// kernel: tpu_custom_call.1
$region0: #{tpu_custom_call.1}
  #allocation0 [shape = 'u32[]', space=smem, size = 0x4, offset = 0x4, fixed_abs, tag = 'smem constant byte address 0x4 - core index']
  #allocation1 [shape = 'u32[144,128]{1,0:T(1,128)}', space=vmem, size = 0x12000, scoped, tag = 'internal scratch']
  %s0 = inlined_call_operand.hbm [shape: bf16[512,128], index: 0, kind: input, shape index: {}]
  %s1 = inlined_call_operand.hbm [shape: bf16[128,128], index: 1, kind: input, shape index: {}]
  %s2 = inlined_call_operand.vmem [shape: f32[1,128], index: 2, kind: input, shape index: {}]
  %s3 = inlined_call_operand.hbm [shape: f32[512,128], index: 3, kind: output, shape index: {}]
  %s4 = sld [smem:[#allocation0]]
  $region30: #{tpu_custom_call.1} parent=0
    _
  %s6 = ssub.s32 1, %s4
  %s7 = scalar_select 0, %s6, %s4
  $region1: #{tpu_custom_call.1} parent=0
    #allocation2 [shape = 'u8[131072]{0}', space=vmem, size = 0x20000, scoped, tag = 'input window, operand 0, single buffered']
    #allocation3 [shape = 's32[1]{0}', space=sflag, size = 0x4, scoped, tag = 'scoped memory for tpu_custom_call.1']
    #allocation4 [shape = 's32[1]{0}', space=sflag, size = 0x4, scoped, tag = 'scoped memory for tpu_custom_call.1']
    #allocation5 [shape = 'u8[32768]{0}', space=vmem, size = 0x8000, scoped, tag = 'input window, operand 1, single buffered']
    #allocation6 [shape = 's32[1]{0}', space=sflag, size = 0x4, scoped, tag = 'scoped memory for tpu_custom_call.1']
    #allocation7 [shape = 'u8[262144]{0}', space=vmem, size = 0x40000, scoped, tag = 'output window, operand 0, single buffered']
    %8 = vsyncpa [#allocation3], 0
    %9 = vsyncpa [#allocation6], 0
    %10 = vsyncpa [#allocation4], 0
    // Predicated region
    $region2: #{tpu_custom_call.1} parent=1 // pred_check
      _
    $region3: #{tpu_custom_call.1} parent=1 // pred_check_branch
      %12 = sbr.rel (0) target = $region5
    $region4: #{tpu_custom_call.1} parent=1 // pred_region
      %s14 = ssub.s32 4096, 4096
      %15 = vsyncadd [#allocation3], %s14
      %s16 = sshll.u32 [#allocation2], 4
      %s17 = int_to_ptr.vmem [resolvable:$true] %s16
      %22 = dma.hbm_to_vmem [thread:$0]  %s0, 4096, %s17, [#allocation3], 64, 64, 4
    $region5: #{tpu_custom_call.1} parent=1 // pred_fallthru
      _
    // Predicated region
    $region6: #{tpu_custom_call.1} parent=1 // pred_check
      _
    $region7: #{tpu_custom_call.1} parent=1 // pred_check_branch
      %24 = sbr.rel (0) target = $region9
    $region8: #{tpu_custom_call.1} parent=1 // pred_region
      %s26 = ssub.s32 1024, 1024
      %27 = vsyncadd [#allocation6], %s26
      %s28 = sshll.u32 [#allocation5], 4
      %s29 = int_to_ptr.vmem [resolvable:$true] %s28
      %34 = dma.hbm_to_vmem [thread:$0]  %s1, 1024, %s29, [#allocation6], 64, 64, 4
    $region9: #{tpu_custom_call.1} parent=1 // pred_fallthru
      _
    // Predicated region
    $region10: #{tpu_custom_call.1} parent=1 // pred_check
      _
    $region11: #{tpu_custom_call.1} parent=1 // pred_check_branch
      %36 = sbr.rel (0) target = $region13
    $region12: #{tpu_custom_call.1} parent=1 // pred_region
      _
    $region13: #{tpu_custom_call.1} parent=1 // pred_fallthru
      _
    // Predicated region
    $region14: #{tpu_custom_call.1} parent=1 // pred_check
      _
    $region15: #{tpu_custom_call.1} parent=1 // pred_check_branch
      %38 = sbr.rel (0) target = $region17
    $region16: #{tpu_custom_call.1} parent=1 // pred_region
      %39 = dma.done [#allocation3], 4096
    $region17: #{tpu_custom_call.1} parent=1 // pred_fallthru
      _
    // Predicated region
    $region18: #{tpu_custom_call.1} parent=1 // pred_check
      _
    $region19: #{tpu_custom_call.1} parent=1 // pred_check_branch
      %41 = sbr.rel (0) target = $region21
    $region20: #{tpu_custom_call.1} parent=1 // pred_region
      %42 = dma.done [#allocation6], 1024
    $region21: #{tpu_custom_call.1} parent=1 // pred_fallthru
      _
    %v44 = vld [vmem:[#allocation2] sm:$0xf]
    %v45 = vld [vmem:[#allocation2 + $0x4] sm:$0xf]
    %v46 = vld [vmem:[#allocation2 + $0x8] sm:$0xf]
    %v47 = vld [vmem:[#allocation2 + $0xc] sm:$0xf]
    %v48 = vld [vmem:[#allocation2 + $0x10] sm:$0xf]
    %v49 = vld [vmem:[#allocation2 + $0x14] sm:$0xf]
    %v50 = vld [vmem:[#allocation2 + $0x18] sm:$0xf]
    %v51 = vld [vmem:[#allocation2 + $0x1c] sm:$0xf]
    %v52 = vld [vmem:[#allocation2 + $0x20] sm:$0xf]
    %v53 = vld [vmem:[#allocation2 + $0x24] sm:$0xf]
    %v54 = vld [vmem:[#allocation2 + $0x28] sm:$0xf]
    %v55 = vld [vmem:[#allocation2 + $0x2c] sm:$0xf]
    %v56 = vld [vmem:[#allocation2 + $0x30] sm:$0xf]
    %v57 = vld [vmem:[#allocation2 + $0x34] sm:$0xf]
    %v58 = vld [vmem:[#allocation2 + $0x38] sm:$0xf]
    %v59 = vld [vmem:[#allocation2 + $0x3c] sm:$0xf]
    %v60 = vld [vmem:[#allocation2 + $0x40] sm:$0xf]
    %v61 = vld [vmem:[#allocation2 + $0x44] sm:$0xf]
    %v62 = vld [vmem:[#allocation2 + $0x48] sm:$0xf]
    %v63 = vld [vmem:[#allocation2 + $0x4c] sm:$0xf]
    %v64 = vld [vmem:[#allocation2 + $0x50] sm:$0xf]
    %v65 = vld [vmem:[#allocation2 + $0x54] sm:$0xf]
    %v66 = vld [vmem:[#allocation2 + $0x58] sm:$0xf]
    %v67 = vld [vmem:[#allocation2 + $0x5c] sm:$0xf]
    %v68 = vld [vmem:[#allocation2 + $0x60] sm:$0xf]
    %v69 = vld [vmem:[#allocation2 + $0x64] sm:$0xf]
    %v70 = vld [vmem:[#allocation2 + $0x68] sm:$0xf]
    %v71 = vld [vmem:[#allocation2 + $0x6c] sm:$0xf]
    %v72 = vld [vmem:[#allocation2 + $0x70] sm:$0xf]
    %v73 = vld [vmem:[#allocation2 + $0x74] sm:$0xf]
    %v74 = vld [vmem:[#allocation2 + $0x78] sm:$0xf]
    %v75 = vld [vmem:[#allocation2 + $0x7c] sm:$0xf]
    %v76 = vld [vmem:[#allocation2 + $0x80] sm:$0xf]
    %v77 = vld [vmem:[#allocation2 + $0x84] sm:$0xf]
    %v78 = vld [vmem:[#allocation2 + $0x88] sm:$0xf]
    %v79 = vld [vmem:[#allocation2 + $0x8c] sm:$0xf]
    %v80 = vld [vmem:[#allocation2 + $0x90] sm:$0xf]
    %v81 = vld [vmem:[#allocation2 + $0x94] sm:$0xf]
    %v82 = vld [vmem:[#allocation2 + $0x98] sm:$0xf]
    %v83 = vld [vmem:[#allocation2 + $0x9c] sm:$0xf]
    %v84 = vld [vmem:[#allocation2 + $0xa0] sm:$0xf]
    %v85 = vld [vmem:[#allocation2 + $0xa4] sm:$0xf]
    %v86 = vld [vmem:[#allocation2 + $0xa8] sm:$0xf]
    %v87 = vld [vmem:[#allocation2 + $0xac] sm:$0xf]
    %v88 = vld [vmem:[#allocation2 + $0xb0] sm:$0xf]
    %v89 = vld [vmem:[#allocation2 + $0xb4] sm:$0xf]
    %v90 = vld [vmem:[#allocation2 + $0xb8] sm:$0xf]
    %v91 = vld [vmem:[#allocation2 + $0xbc] sm:$0xf]
    %v92 = vld [vmem:[#allocation2 + $0xc0] sm:$0xf]
    %v93 = vld [vmem:[#allocation2 + $0xc4] sm:$0xf]
    %v94 = vld [vmem:[#allocation2 + $0xc8] sm:$0xf]
    %v95 = vld [vmem:[#allocation2 + $0xcc] sm:$0xf]
    %v96 = vld [vmem:[#allocation2 + $0xd0] sm:$0xf]
    %v97 = vld [vmem:[#allocation2 + $0xd4] sm:$0xf]
    %v98 = vld [vmem:[#allocation2 + $0xd8] sm:$0xf]
    %v99 = vld [vmem:[#allocation2 + $0xdc] sm:$0xf]
    %v100 = vld [vmem:[#allocation2 + $0xe0] sm:$0xf]
    %v101 = vld [vmem:[#allocation2 + $0xe4] sm:$0xf]
    %v102 = vld [vmem:[#allocation2 + $0xe8] sm:$0xf]
    %v103 = vld [vmem:[#allocation2 + $0xec] sm:$0xf]
    %v104 = vld [vmem:[#allocation2 + $0xf0] sm:$0xf]
    %v105 = vld [vmem:[#allocation2 + $0xf4] sm:$0xf]
    %v106 = vld [vmem:[#allocation2 + $0xf8] sm:$0xf]
    %v107 = vld [vmem:[#allocation2 + $0xfc] sm:$0xf]
    %v108 = vld [vmem:[#allocation5] sm:$0xf]
    %v109 = vld [vmem:[#allocation5 + $0x4] sm:$0xf]
    %v110 = vld [vmem:[#allocation5 + $0x8] sm:$0xf]
    %v111 = vld [vmem:[#allocation5 + $0xc] sm:$0xf]
    %v112 = vld [vmem:[#allocation5 + $0x10] sm:$0xf]
    %v113 = vld [vmem:[#allocation5 + $0x14] sm:$0xf]
    %v114 = vld [vmem:[#allocation5 + $0x18] sm:$0xf]
    %v115 = vld [vmem:[#allocation5 + $0x1c] sm:$0xf]
    %v116 = vld [vmem:[#allocation5 + $0x20] sm:$0xf]
    %v117 = vld [vmem:[#allocation5 + $0x24] sm:$0xf]
    %v118 = vld [vmem:[#allocation5 + $0x28] sm:$0xf]
    %v119 = vld [vmem:[#allocation5 + $0x2c] sm:$0xf]
    %v120 = vld [vmem:[#allocation5 + $0x30] sm:$0xf]
    %v121 = vld [vmem:[#allocation5 + $0x34] sm:$0xf]
    %v122 = vld [vmem:[#allocation5 + $0x38] sm:$0xf]
    %v123 = vld [vmem:[#allocation5 + $0x3c] sm:$0xf]
    %v124 = vld [vmem:[%s2] sm:$0x1]
    %v126 = vlaneseq
    %v127 = vshrl.u32 %v126, 7
    %v128 = vsub.s32 0, %v127
    %v129 = vrot.slane %v124, %v128
    %v195 = vunpack.c.l.b16 %v44
    %v196 = vunpack.c.l.b16 %v45
    %v197 = vunpack.c.l.b16 %v46
    %v198 = vunpack.c.l.b16 %v47
    %v199 = vunpack.c.l.b16 %v48
    %v200 = vunpack.c.l.b16 %v49
    %v201 = vunpack.c.l.b16 %v50
    %v202 = vunpack.c.l.b16 %v51
    %v203 = vunpack.c.l.b16 %v52
    %v204 = vunpack.c.l.b16 %v53
    %v205 = vunpack.c.l.b16 %v54
    %v206 = vunpack.c.l.b16 %v55
    %v207 = vunpack.c.l.b16 %v56
    %v208 = vunpack.c.l.b16 %v57
    %v209 = vunpack.c.l.b16 %v58
    %v210 = vunpack.c.l.b16 %v59
    %v211 = vunpack.c.l.b16 %v60
    %v212 = vunpack.c.l.b16 %v61
    %v213 = vunpack.c.l.b16 %v62
    %v214 = vunpack.c.l.b16 %v63
    %v215 = vunpack.c.l.b16 %v64
    %v216 = vunpack.c.l.b16 %v65
    %v217 = vunpack.c.l.b16 %v66
    %v218 = vunpack.c.l.b16 %v67
    %v219 = vunpack.c.l.b16 %v68
    %v220 = vunpack.c.l.b16 %v69
    %v221 = vunpack.c.l.b16 %v70
    %v222 = vunpack.c.l.b16 %v71
    %v223 = vunpack.c.l.b16 %v72
    %v224 = vunpack.c.l.b16 %v73
    %v225 = vunpack.c.l.b16 %v74
    %v226 = vunpack.c.l.b16 %v75
    %v227 = vunpack.c.l.b16 %v76
    %v228 = vunpack.c.l.b16 %v77
    %v229 = vunpack.c.l.b16 %v78
    %v230 = vunpack.c.l.b16 %v79
    %v231 = vunpack.c.l.b16 %v80
    %v232 = vunpack.c.l.b16 %v81
    %v233 = vunpack.c.l.b16 %v82
    %v234 = vunpack.c.l.b16 %v83
    %v235 = vunpack.c.l.b16 %v84
    %v236 = vunpack.c.l.b16 %v85
    %v237 = vunpack.c.l.b16 %v86
    %v238 = vunpack.c.l.b16 %v87
    %v239 = vunpack.c.l.b16 %v88
    %v240 = vunpack.c.l.b16 %v89
    %v241 = vunpack.c.l.b16 %v90
    %v242 = vunpack.c.l.b16 %v91
    %v243 = vunpack.c.l.b16 %v92
    %v244 = vunpack.c.l.b16 %v93
    %v245 = vunpack.c.l.b16 %v94
    %v246 = vunpack.c.l.b16 %v95
    %v247 = vunpack.c.l.b16 %v96
    %v248 = vunpack.c.l.b16 %v97
    %v249 = vunpack.c.l.b16 %v98
    %v250 = vunpack.c.l.b16 %v99
    %v251 = vunpack.c.l.b16 %v100
    %v252 = vunpack.c.l.b16 %v101
    %v253 = vunpack.c.l.b16 %v102
    %v254 = vunpack.c.l.b16 %v103
    %v255 = vunpack.c.l.b16 %v104
    %v256 = vunpack.c.l.b16 %v105
    %v257 = vunpack.c.l.b16 %v106
    %v258 = vunpack.c.l.b16 %v107
    %v259 = vpack.c.b16 %v196, %v195
    %v260 = vpack.c.b16 %v198, %v197
    %v261 = vpack.c.b16 %v200, %v199
    %v262 = vpack.c.b16 %v202, %v201
    %v263 = vpack.c.b16 %v204, %v203
    %v264 = vpack.c.b16 %v206, %v205
    %v265 = vpack.c.b16 %v208, %v207
    %v266 = vpack.c.b16 %v210, %v209
    %v267 = vpack.c.b16 %v212, %v211
    %v268 = vpack.c.b16 %v214, %v213
    %v269 = vpack.c.b16 %v216, %v215
    %v270 = vpack.c.b16 %v218, %v217
    %v271 = vpack.c.b16 %v220, %v219
    %v272 = vpack.c.b16 %v222, %v221
    %v273 = vpack.c.b16 %v224, %v223
    %v274 = vpack.c.b16 %v226, %v225
    %v275 = vpack.c.b16 %v228, %v227
    %v276 = vpack.c.b16 %v230, %v229
    %v277 = vpack.c.b16 %v232, %v231
    %v278 = vpack.c.b16 %v234, %v233
    %v279 = vpack.c.b16 %v236, %v235
    %v280 = vpack.c.b16 %v238, %v237
    %v281 = vpack.c.b16 %v240, %v239
    %v282 = vpack.c.b16 %v242, %v241
    %v283 = vpack.c.b16 %v244, %v243
    %v284 = vpack.c.b16 %v246, %v245
    %v285 = vpack.c.b16 %v248, %v247
    %v286 = vpack.c.b16 %v250, %v249
    %v287 = vpack.c.b16 %v252, %v251
    %v288 = vpack.c.b16 %v254, %v253
    %v289 = vpack.c.b16 %v256, %v255
    %v290 = vpack.c.b16 %v258, %v257
    %v339 = vunpack.c.l.b16 %v108
    %v340 = vunpack.c.l.b16 %v109
    %v341 = vunpack.c.l.b16 %v110
    %v342 = vunpack.c.l.b16 %v111
    %v343 = vunpack.c.l.b16 %v112
    %v344 = vunpack.c.l.b16 %v113
    %v345 = vunpack.c.l.b16 %v114
    %v346 = vunpack.c.l.b16 %v115
    %v347 = vunpack.c.l.b16 %v116
    %v348 = vunpack.c.l.b16 %v117
    %v349 = vunpack.c.l.b16 %v118
    %v350 = vunpack.c.l.b16 %v119
    %v351 = vunpack.c.l.b16 %v120
    %v352 = vunpack.c.l.b16 %v121
    %v353 = vunpack.c.l.b16 %v122
    %v354 = vunpack.c.l.b16 %v123
    %v355 = vpack.c.b16 %v340, %v339
    %v356 = vpack.c.b16 %v342, %v341
    %v357 = vpack.c.b16 %v344, %v343
    %v358 = vpack.c.b16 %v346, %v345
    %v359 = vpack.c.b16 %v348, %v347
    %v360 = vpack.c.b16 %v350, %v349
    %v361 = vpack.c.b16 %v352, %v351
    %v362 = vpack.c.b16 %v354, %v353
    %371 = vmatprep.subr.bf16.mxu0 0
    %372 = vmatpush1.bf16.msra.mxu0 %v362
    %373 = vmatprep.subr.bf16.mxu0 0
    %374 = vmatpush1.bf16.msra.mxu0 %v361
    %375 = vmatprep.subr.bf16.mxu0 0
    %376 = vmatpush1.bf16.msra.mxu0 %v360
    %377 = vmatprep.subr.bf16.mxu0 0
    %378 = vmatpush1.bf16.msra.mxu0 %v359
    %379 = vmatprep.subr.bf16.mxu0 0
    %380 = vmatpush1.bf16.msra.mxu0 %v358
    %381 = vmatprep.subr.bf16.mxu0 0
    %382 = vmatpush1.bf16.msra.mxu0 %v357
    %383 = vmatprep.subr.bf16.mxu0 0
    %384 = vmatpush1.bf16.msra.mxu0 %v356
    %385 = vmatprep.subr.bf16.mxu0 0
    %386 = vmatpush1.bf16.msra.mxu0 %v355
    %387 = vmatprep.subr.bf16.mxu0 0
    %388 = vmatpush2.bf16.msra.mxu0 0
    %389 = vmatprep.subr.bf16.mxu0 0
    %390 = vmatpush2.bf16.msra.mxu0 0
    %391 = vmatprep.subr.bf16.mxu0 0
    %392 = vmatpush2.bf16.msra.mxu0 0
    %393 = vmatprep.subr.bf16.mxu0 0
    %394 = vmatpush2.bf16.msra.mxu0 0
    %395 = vmatprep.subr.bf16.mxu0 0
    %396 = vmatpush2.bf16.msra.mxu0 0
    %397 = vmatprep.subr.bf16.mxu0 0
    %398 = vmatpush2.bf16.msra.mxu0 0
    %399 = vmatprep.subr.bf16.mxu0 0
    %400 = vmatpush2.bf16.msra.mxu0 0
    %401 = vmatprep.subr.bf16.mxu0 0
    %402 = vmatpush2.bf16.msra.mxu0 0
    %403 = vmatprep.mubr.bf16.mxu0 0
    %404 = vmatmul.mubr.bf16.gmra.mxu0 %v259
    %v405 = vpop.f32.mrf.mxu0
    %v406 = vadd.f32 %v129, %v405
    %v407 = vpop.f32.mrf.mxu0
    %v408 = vpop.f32.mrf.mxu0
    %v409 = vadd.f32 %v129, %v408
    %v410 = vpop.f32.mrf.mxu0
    %411 = vmatprep.mubr.bf16.mxu0 0
    %412 = vmatmul.mubr.bf16.gmra.mxu0 %v260
    %v413 = vpop.f32.mrf.mxu0
    %v414 = vadd.f32 %v129, %v413
    %v415 = vpop.f32.mrf.mxu0
    %v416 = vpop.f32.mrf.mxu0
    %v417 = vadd.f32 %v129, %v416
    %v418 = vpop.f32.mrf.mxu0
    %419 = vmatprep.mubr.bf16.mxu0 0
    %420 = vmatmul.mubr.bf16.gmra.mxu0 %v261
    %v421 = vpop.f32.mrf.mxu0
    %v422 = vadd.f32 %v129, %v421
    %v423 = vpop.f32.mrf.mxu0
    %v424 = vpop.f32.mrf.mxu0
    %v425 = vadd.f32 %v129, %v424
    %v426 = vpop.f32.mrf.mxu0
    %427 = vmatprep.mubr.bf16.mxu0 0
    %428 = vmatmul.mubr.bf16.gmra.mxu0 %v262
    %v429 = vpop.f32.mrf.mxu0
    %v430 = vadd.f32 %v129, %v429
    %v431 = vpop.f32.mrf.mxu0
    %v432 = vpop.f32.mrf.mxu0
    %v433 = vadd.f32 %v129, %v432
    %v434 = vpop.f32.mrf.mxu0
    %435 = vmatprep.mubr.bf16.mxu0 0
    %436 = vmatmul.mubr.bf16.gmra.mxu0 %v263
    %v437 = vpop.f32.mrf.mxu0
    %v438 = vadd.f32 %v129, %v437
    %v439 = vpop.f32.mrf.mxu0
    %v440 = vpop.f32.mrf.mxu0
    %v441 = vadd.f32 %v129, %v440
    %v442 = vpop.f32.mrf.mxu0
    %443 = vmatprep.mubr.bf16.mxu0 0
    %444 = vmatmul.mubr.bf16.gmra.mxu0 %v264
    %v445 = vpop.f32.mrf.mxu0
    %v446 = vadd.f32 %v129, %v445
    %v447 = vpop.f32.mrf.mxu0
    %v448 = vpop.f32.mrf.mxu0
    %v449 = vadd.f32 %v129, %v448
    %v450 = vpop.f32.mrf.mxu0
    %451 = vmatprep.mubr.bf16.mxu0 0
    %452 = vmatmul.mubr.bf16.gmra.mxu0 %v265
    %v453 = vpop.f32.mrf.mxu0
    %v454 = vadd.f32 %v129, %v453
    %v455 = vpop.f32.mrf.mxu0
    %v456 = vpop.f32.mrf.mxu0
    %v457 = vadd.f32 %v129, %v456
    %v458 = vpop.f32.mrf.mxu0
    %459 = vmatprep.mubr.bf16.mxu0 0
    %460 = vmatmul.mubr.bf16.gmra.mxu0 %v266
    %v461 = vpop.f32.mrf.mxu0
    %v462 = vadd.f32 %v129, %v461
    %v463 = vpop.f32.mrf.mxu0
    %v464 = vpop.f32.mrf.mxu0
    %v465 = vadd.f32 %v129, %v464
    %v466 = vpop.f32.mrf.mxu0
    %467 = vmatprep.mubr.bf16.mxu0 0
    %468 = vmatmul.mubr.bf16.gmra.mxu0 %v267
    %v469 = vpop.f32.mrf.mxu0
    %v470 = vadd.f32 %v129, %v469
    %v471 = vpop.f32.mrf.mxu0
    %v472 = vpop.f32.mrf.mxu0
    %v473 = vadd.f32 %v129, %v472
    %v474 = vpop.f32.mrf.mxu0
    %475 = vmatprep.mubr.bf16.mxu0 0
    %476 = vmatmul.mubr.bf16.gmra.mxu0 %v268
    %v477 = vpop.f32.mrf.mxu0
    %v478 = vadd.f32 %v129, %v477
    %v479 = vpop.f32.mrf.mxu0
    %v480 = vpop.f32.mrf.mxu0
    %v481 = vadd.f32 %v129, %v480
    %v482 = vpop.f32.mrf.mxu0
    %483 = vmatprep.mubr.bf16.mxu0 0
    %484 = vmatmul.mubr.bf16.gmra.mxu0 %v269
    %v485 = vpop.f32.mrf.mxu0
    %v486 = vadd.f32 %v129, %v485
    %v487 = vpop.f32.mrf.mxu0
    %v488 = vpop.f32.mrf.mxu0
    %v489 = vadd.f32 %v129, %v488
    %v490 = vpop.f32.mrf.mxu0
    %491 = vmatprep.mubr.bf16.mxu0 0
    %492 = vmatmul.mubr.bf16.gmra.mxu0 %v270
    %v493 = vpop.f32.mrf.mxu0
    %v494 = vadd.f32 %v129, %v493
    %v495 = vpop.f32.mrf.mxu0
    %v496 = vpop.f32.mrf.mxu0
    %v497 = vadd.f32 %v129, %v496
    %v498 = vpop.f32.mrf.mxu0
    %499 = vmatprep.mubr.bf16.mxu0 0
    %500 = vmatmul.mubr.bf16.gmra.mxu0 %v271
    %v501 = vpop.f32.mrf.mxu0
    %v502 = vadd.f32 %v129, %v501
    %v503 = vpop.f32.mrf.mxu0
    %v504 = vpop.f32.mrf.mxu0
    %v505 = vadd.f32 %v129, %v504
    %v506 = vpop.f32.mrf.mxu0
    %507 = vmatprep.mubr.bf16.mxu0 0
    %508 = vmatmul.mubr.bf16.gmra.mxu0 %v272
    %v509 = vpop.f32.mrf.mxu0
    %v510 = vadd.f32 %v129, %v509
    %v511 = vpop.f32.mrf.mxu0
    %v512 = vpop.f32.mrf.mxu0
    %v513 = vadd.f32 %v129, %v512
    %v514 = vpop.f32.mrf.mxu0
    %515 = vmatprep.mubr.bf16.mxu0 0
    %516 = vmatmul.mubr.bf16.gmra.mxu0 %v273
    %v517 = vpop.f32.mrf.mxu0
    %v518 = vadd.f32 %v129, %v517
    %v519 = vpop.f32.mrf.mxu0
    %v520 = vpop.f32.mrf.mxu0
    %v521 = vadd.f32 %v129, %v520
    %v522 = vpop.f32.mrf.mxu0
    %523 = vmatprep.mubr.bf16.mxu0 0
    %524 = vmatmul.mubr.bf16.gmra.mxu0 %v274
    %v525 = vpop.f32.mrf.mxu0
    %v526 = vadd.f32 %v129, %v525
    %v527 = vpop.f32.mrf.mxu0
    %v528 = vpop.f32.mrf.mxu0
    %v529 = vadd.f32 %v129, %v528
    %v530 = vpop.f32.mrf.mxu0
    %531 = vmatprep.mubr.bf16.mxu0 0
    %532 = vmatmul.mubr.bf16.gmra.mxu0 %v275
    %v533 = vpop.f32.mrf.mxu0
    %v534 = vadd.f32 %v129, %v533
    %v535 = vpop.f32.mrf.mxu0
    %v536 = vpop.f32.mrf.mxu0
    %v537 = vadd.f32 %v129, %v536
    %v538 = vpop.f32.mrf.mxu0
    %539 = vmatprep.mubr.bf16.mxu0 0
    %540 = vmatmul.mubr.bf16.gmra.mxu0 %v276
    %v541 = vpop.f32.mrf.mxu0
    %v542 = vadd.f32 %v129, %v541
    %v543 = vpop.f32.mrf.mxu0
    %v544 = vpop.f32.mrf.mxu0
    %v545 = vadd.f32 %v129, %v544
    %v546 = vpop.f32.mrf.mxu0
    %547 = vmatprep.mubr.bf16.mxu0 0
    %548 = vmatmul.mubr.bf16.gmra.mxu0 %v277
    %v549 = vpop.f32.mrf.mxu0
    %v550 = vadd.f32 %v129, %v549
    %v551 = vpop.f32.mrf.mxu0
    %v552 = vpop.f32.mrf.mxu0
    %v553 = vadd.f32 %v129, %v552
    %v554 = vpop.f32.mrf.mxu0
    %555 = vmatprep.mubr.bf16.mxu0 0
    %556 = vmatmul.mubr.bf16.gmra.mxu0 %v278
    %v557 = vpop.f32.mrf.mxu0
    %v558 = vadd.f32 %v129, %v557
    %v559 = vpop.f32.mrf.mxu0
    %v560 = vpop.f32.mrf.mxu0
    %v561 = vadd.f32 %v129, %v560
    %v562 = vpop.f32.mrf.mxu0
    %563 = vmatprep.mubr.bf16.mxu0 0
    %564 = vmatmul.mubr.bf16.gmra.mxu0 %v279
    %v565 = vpop.f32.mrf.mxu0
    %v566 = vadd.f32 %v129, %v565
    %v567 = vpop.f32.mrf.mxu0
    %v568 = vpop.f32.mrf.mxu0
    %v569 = vadd.f32 %v129, %v568
    %v570 = vpop.f32.mrf.mxu0
    %571 = vmatprep.mubr.bf16.mxu0 0
    %572 = vmatmul.mubr.bf16.gmra.mxu0 %v280
    %v573 = vpop.f32.mrf.mxu0
    %v574 = vadd.f32 %v129, %v573
    %v575 = vpop.f32.mrf.mxu0
    %v576 = vpop.f32.mrf.mxu0
    %v577 = vadd.f32 %v129, %v576
    %v578 = vpop.f32.mrf.mxu0
    %579 = vmatprep.mubr.bf16.mxu0 0
    %580 = vmatmul.mubr.bf16.gmra.mxu0 %v281
    %v581 = vpop.f32.mrf.mxu0
    %v582 = vadd.f32 %v129, %v581
    %v583 = vpop.f32.mrf.mxu0
    %v584 = vpop.f32.mrf.mxu0
    %v585 = vadd.f32 %v129, %v584
    %v586 = vpop.f32.mrf.mxu0
    %587 = vmatprep.mubr.bf16.mxu0 0
    %588 = vmatmul.mubr.bf16.gmra.mxu0 %v282
    %v589 = vpop.f32.mrf.mxu0
    %v590 = vadd.f32 %v129, %v589
    %v591 = vpop.f32.mrf.mxu0
    %v592 = vpop.f32.mrf.mxu0
    %v593 = vadd.f32 %v129, %v592
    %v594 = vpop.f32.mrf.mxu0
    %595 = vmatprep.mubr.bf16.mxu0 0
    %596 = vmatmul.mubr.bf16.gmra.mxu0 %v283
    %v597 = vpop.f32.mrf.mxu0
    %v598 = vadd.f32 %v129, %v597
    %v599 = vpop.f32.mrf.mxu0
    %v600 = vpop.f32.mrf.mxu0
    %v601 = vadd.f32 %v129, %v600
    %v602 = vpop.f32.mrf.mxu0
    %603 = vmatprep.mubr.bf16.mxu0 0
    %604 = vmatmul.mubr.bf16.gmra.mxu0 %v284
    %v605 = vpop.f32.mrf.mxu0
    %v606 = vadd.f32 %v129, %v605
    %v607 = vpop.f32.mrf.mxu0
    %v608 = vpop.f32.mrf.mxu0
    %v609 = vadd.f32 %v129, %v608
    %v610 = vpop.f32.mrf.mxu0
    %611 = vmatprep.mubr.bf16.mxu0 0
    %612 = vmatmul.mubr.bf16.gmra.mxu0 %v285
    %v613 = vpop.f32.mrf.mxu0
    %v614 = vadd.f32 %v129, %v613
    %v615 = vpop.f32.mrf.mxu0
    %v616 = vpop.f32.mrf.mxu0
    %v617 = vadd.f32 %v129, %v616
    %v618 = vpop.f32.mrf.mxu0
    %619 = vmatprep.mubr.bf16.mxu0 0
    %620 = vmatmul.mubr.bf16.gmra.mxu0 %v286
    %v621 = vpop.f32.mrf.mxu0
    %v622 = vadd.f32 %v129, %v621
    %v623 = vpop.f32.mrf.mxu0
    %v624 = vpop.f32.mrf.mxu0
    %v625 = vadd.f32 %v129, %v624
    %v626 = vpop.f32.mrf.mxu0
    %627 = vmatprep.mubr.bf16.mxu0 0
    %628 = vmatmul.mubr.bf16.gmra.mxu0 %v287
    %v629 = vpop.f32.mrf.mxu0
    %v630 = vadd.f32 %v129, %v629
    %v631 = vpop.f32.mrf.mxu0
    %v632 = vpop.f32.mrf.mxu0
    %v633 = vadd.f32 %v129, %v632
    %v634 = vpop.f32.mrf.mxu0
    %635 = vmatprep.mubr.bf16.mxu0 0
    %636 = vmatmul.mubr.bf16.gmra.mxu0 %v288
    %v637 = vpop.f32.mrf.mxu0
    %v638 = vadd.f32 %v129, %v637
    %v639 = vpop.f32.mrf.mxu0
    %v640 = vpop.f32.mrf.mxu0
    %v641 = vadd.f32 %v129, %v640
    %v642 = vpop.f32.mrf.mxu0
    %643 = vmatprep.mubr.bf16.mxu0 0
    %644 = vmatmul.mubr.bf16.gmra.mxu0 %v289
    %v645 = vpop.f32.mrf.mxu0
    %v646 = vadd.f32 %v129, %v645
    %v647 = vpop.f32.mrf.mxu0
    %v648 = vpop.f32.mrf.mxu0
    %v649 = vadd.f32 %v129, %v648
    %v650 = vpop.f32.mrf.mxu0
    %651 = vmatprep.mubr.bf16.mxu0 0
    %652 = vmatmul.mubr.bf16.gmra.mxu0 %v290
    %v653 = vpop.f32.mrf.mxu0
    %v654 = vadd.f32 %v129, %v653
    %v655 = vpop.f32.mrf.mxu0
    %v656 = vpop.f32.mrf.mxu0
    %v657 = vadd.f32 %v129, %v656
    %v658 = vpop.f32.mrf.mxu0
    %659 = vdwg.mxu0
    %v660 = vsub.f32 0.0, %v406
    %v661 = vsub.f32 0.0, %v409
    %v662 = vsub.f32 0.0, %v414
    %v663 = vsub.f32 0.0, %v417
    %v664 = vsub.f32 0.0, %v422
    %v665 = vsub.f32 0.0, %v425
    %v666 = vsub.f32 0.0, %v430
    %v667 = vsub.f32 0.0, %v433
    %v668 = vsub.f32 0.0, %v438
    %v669 = vsub.f32 0.0, %v441
    %v670 = vsub.f32 0.0, %v446
    %v671 = vsub.f32 0.0, %v449
    %v672 = vsub.f32 0.0, %v454
    %v673 = vsub.f32 0.0, %v457
    %v674 = vsub.f32 0.0, %v462
    %v675 = vsub.f32 0.0, %v465
    %v676 = vsub.f32 0.0, %v470
    %v677 = vsub.f32 0.0, %v473
    %v678 = vsub.f32 0.0, %v478
    %v679 = vsub.f32 0.0, %v481
    %v680 = vsub.f32 0.0, %v486
    %v681 = vsub.f32 0.0, %v489
    %v682 = vsub.f32 0.0, %v494
    %v683 = vsub.f32 0.0, %v497
    %v684 = vsub.f32 0.0, %v502
    %v685 = vsub.f32 0.0, %v505
    %v686 = vsub.f32 0.0, %v510
    %v687 = vsub.f32 0.0, %v513
    %v688 = vsub.f32 0.0, %v518
    %v689 = vsub.f32 0.0, %v521
    %v690 = vsub.f32 0.0, %v526
    %v691 = vsub.f32 0.0, %v529
    %v692 = vsub.f32 0.0, %v534
    %v693 = vsub.f32 0.0, %v537
    %v694 = vsub.f32 0.0, %v542
    %v695 = vsub.f32 0.0, %v545
    %v696 = vsub.f32 0.0, %v550
    %v697 = vsub.f32 0.0, %v553
    %v698 = vsub.f32 0.0, %v558
    %v699 = vsub.f32 0.0, %v561
    %v700 = vsub.f32 0.0, %v566
    %v701 = vsub.f32 0.0, %v569
    %v702 = vsub.f32 0.0, %v574
    %v703 = vsub.f32 0.0, %v577
    %v704 = vsub.f32 0.0, %v582
    %v705 = vsub.f32 0.0, %v585
    %v706 = vsub.f32 0.0, %v590
    %v707 = vsub.f32 0.0, %v593
    %v708 = vsub.f32 0.0, %v598
    %v709 = vsub.f32 0.0, %v601
    %v710 = vsub.f32 0.0, %v606
    %v711 = vsub.f32 0.0, %v609
    %v712 = vsub.f32 0.0, %v614
    %v713 = vsub.f32 0.0, %v617
    %v714 = vsub.f32 0.0, %v622
    %v715 = vsub.f32 0.0, %v625
    %v716 = vsub.f32 0.0, %v630
    %v717 = vsub.f32 0.0, %v633
    %v718 = vsub.f32 0.0, %v638
    %v719 = vsub.f32 0.0, %v641
    %v720 = vsub.f32 0.0, %v646
    %v721 = vsub.f32 0.0, %v649
    %v722 = vsub.f32 0.0, %v654
    %v723 = vsub.f32 0.0, %v657
    %v724 = vmul.f32 %v660, 1.442695
    %v725 = vpow.pop %v724
    %v726 = vmul.f32 %v661, 1.442695
    %v727 = vpow.pop %v726
    %v728 = vmul.f32 %v662, 1.442695
    %v729 = vpow.pop %v728
    %v730 = vmul.f32 %v663, 1.442695
    %v731 = vpow.pop %v730
    %v732 = vmul.f32 %v664, 1.442695
    %v733 = vpow.pop %v732
    %v734 = vmul.f32 %v665, 1.442695
    %v735 = vpow.pop %v734
    %v736 = vmul.f32 %v666, 1.442695
    %v737 = vpow.pop %v736
    %v738 = vmul.f32 %v667, 1.442695
    %v739 = vpow.pop %v738
    %v740 = vmul.f32 %v668, 1.442695
    %v741 = vpow.pop %v740
    %v742 = vmul.f32 %v669, 1.442695
    %v743 = vpow.pop %v742
    %v744 = vmul.f32 %v670, 1.442695
    %v745 = vpow.pop %v744
    %v746 = vmul.f32 %v671, 1.442695
    %v747 = vpow.pop %v746
    %v748 = vmul.f32 %v672, 1.442695
    %v749 = vpow.pop %v748
    %v750 = vmul.f32 %v673, 1.442695
    %v751 = vpow.pop %v750
    %v752 = vmul.f32 %v674, 1.442695
    %v753 = vpow.pop %v752
    %v754 = vmul.f32 %v675, 1.442695
    %v755 = vpow.pop %v754
    %v756 = vmul.f32 %v676, 1.442695
    %v757 = vpow.pop %v756
    %v758 = vmul.f32 %v677, 1.442695
    %v759 = vpow.pop %v758
    %v760 = vmul.f32 %v678, 1.442695
    %v761 = vpow.pop %v760
    %v762 = vmul.f32 %v679, 1.442695
    %v763 = vpow.pop %v762
    %v764 = vmul.f32 %v680, 1.442695
    %v765 = vpow.pop %v764
    %v766 = vmul.f32 %v681, 1.442695
    %v767 = vpow.pop %v766
    %v768 = vmul.f32 %v682, 1.442695
    %v769 = vpow.pop %v768
    %v770 = vmul.f32 %v683, 1.442695
    %v771 = vpow.pop %v770
    %v772 = vmul.f32 %v684, 1.442695
    %v773 = vpow.pop %v772
    %v774 = vmul.f32 %v685, 1.442695
    %v775 = vpow.pop %v774
    %v776 = vmul.f32 %v686, 1.442695
    %v777 = vpow.pop %v776
    %v778 = vmul.f32 %v687, 1.442695
    %v779 = vpow.pop %v778
    %v780 = vmul.f32 %v688, 1.442695
    %v781 = vpow.pop %v780
    %v782 = vmul.f32 %v689, 1.442695
    %v783 = vpow.pop %v782
    %v784 = vmul.f32 %v690, 1.442695
    %v785 = vpow.pop %v784
    %v786 = vmul.f32 %v691, 1.442695
    %v787 = vpow.pop %v786
    %v788 = vmul.f32 %v692, 1.442695
    %v789 = vpow.pop %v788
    %v790 = vmul.f32 %v693, 1.442695
    %v791 = vpow.pop %v790
    %v792 = vmul.f32 %v694, 1.442695
    %v793 = vpow.pop %v792
    %v794 = vmul.f32 %v695, 1.442695
    %v795 = vpow.pop %v794
    %v796 = vmul.f32 %v696, 1.442695
    %v797 = vpow.pop %v796
    %v798 = vmul.f32 %v697, 1.442695
    %v799 = vpow.pop %v798
    %v800 = vmul.f32 %v698, 1.442695
    %v801 = vpow.pop %v800
    %v802 = vmul.f32 %v699, 1.442695
    %v803 = vpow.pop %v802
    %v804 = vmul.f32 %v700, 1.442695
    %v805 = vpow.pop %v804
    %v806 = vmul.f32 %v701, 1.442695
    %v807 = vpow.pop %v806
    %v808 = vmul.f32 %v702, 1.442695
    %v809 = vpow.pop %v808
    %v810 = vmul.f32 %v703, 1.442695
    %v811 = vpow.pop %v810
    %v812 = vmul.f32 %v704, 1.442695
    %v813 = vpow.pop %v812
    %v814 = vmul.f32 %v705, 1.442695
    %v815 = vpow.pop %v814
    %v816 = vmul.f32 %v706, 1.442695
    %v817 = vpow.pop %v816
    %v818 = vmul.f32 %v707, 1.442695
    %v819 = vpow.pop %v818
    %v820 = vmul.f32 %v708, 1.442695
    %v821 = vpow.pop %v820
    %v822 = vmul.f32 %v709, 1.442695
    %v823 = vpow.pop %v822
    %v824 = vmul.f32 %v710, 1.442695
    %v825 = vpow.pop %v824
    %v826 = vmul.f32 %v711, 1.442695
    %v827 = vpow.pop %v826
    %v828 = vmul.f32 %v712, 1.442695
    %v829 = vpow.pop %v828
    %v830 = vmul.f32 %v713, 1.442695
    %v831 = vpow.pop %v830
    %v832 = vmul.f32 %v714, 1.442695
    %v833 = vpow.pop %v832
    %v834 = vmul.f32 %v715, 1.442695
    %v835 = vpow.pop %v834
    %v836 = vmul.f32 %v716, 1.442695
    %v837 = vpow.pop %v836
    %v838 = vmul.f32 %v717, 1.442695
    %v839 = vpow.pop %v838
    %v840 = vmul.f32 %v718, 1.442695
    %v841 = vpow.pop %v840
    %v842 = vmul.f32 %v719, 1.442695
    %v843 = vpow.pop %v842
    %v844 = vmul.f32 %v720, 1.442695
    %v845 = vpow.pop %v844
    %v846 = vmul.f32 %v721, 1.442695
    %v847 = vpow.pop %v846
    %v848 = vmul.f32 %v722, 1.442695
    %v849 = vpow.pop %v848
    %v850 = vmul.f32 %v723, 1.442695
    %v851 = vpow.pop %v850
    %v852 = vadd.f32 %v725, 1.0
    %v853 = vadd.f32 %v727, 1.0
    %v854 = vadd.f32 %v729, 1.0
    %v855 = vadd.f32 %v731, 1.0
    %v856 = vadd.f32 %v733, 1.0
    %v857 = vadd.f32 %v735, 1.0
    %v858 = vadd.f32 %v737, 1.0
    %v859 = vadd.f32 %v739, 1.0
    %v860 = vadd.f32 %v741, 1.0
    %v861 = vadd.f32 %v743, 1.0
    %v862 = vadd.f32 %v745, 1.0
    %v863 = vadd.f32 %v747, 1.0
    %v864 = vadd.f32 %v749, 1.0
    %v865 = vadd.f32 %v751, 1.0
    %v866 = vadd.f32 %v753, 1.0
    %v867 = vadd.f32 %v755, 1.0
    %v868 = vadd.f32 %v757, 1.0
    %v869 = vadd.f32 %v759, 1.0
    %v870 = vadd.f32 %v761, 1.0
    %v871 = vadd.f32 %v763, 1.0
    %v872 = vadd.f32 %v765, 1.0
    %v873 = vadd.f32 %v767, 1.0
    %v874 = vadd.f32 %v769, 1.0
    %v875 = vadd.f32 %v771, 1.0
    %v876 = vadd.f32 %v773, 1.0
    %v877 = vadd.f32 %v775, 1.0
    %v878 = vadd.f32 %v777, 1.0
    %v879 = vadd.f32 %v779, 1.0
    %v880 = vadd.f32 %v781, 1.0
    %v881 = vadd.f32 %v783, 1.0
    %v882 = vadd.f32 %v785, 1.0
    %v883 = vadd.f32 %v787, 1.0
    %v884 = vadd.f32 %v789, 1.0
    %v885 = vadd.f32 %v791, 1.0
    %v886 = vadd.f32 %v793, 1.0
    %v887 = vadd.f32 %v795, 1.0
    %v888 = vadd.f32 %v797, 1.0
    %v889 = vadd.f32 %v799, 1.0
    %v890 = vadd.f32 %v801, 1.0
    %v891 = vadd.f32 %v803, 1.0
    %v892 = vadd.f32 %v805, 1.0
    %v893 = vadd.f32 %v807, 1.0
    %v894 = vadd.f32 %v809, 1.0
    %v895 = vadd.f32 %v811, 1.0
    %v896 = vadd.f32 %v813, 1.0
    %v897 = vadd.f32 %v815, 1.0
    %v898 = vadd.f32 %v817, 1.0
    %v899 = vadd.f32 %v819, 1.0
    %v900 = vadd.f32 %v821, 1.0
    %v901 = vadd.f32 %v823, 1.0
    %v902 = vadd.f32 %v825, 1.0
    %v903 = vadd.f32 %v827, 1.0
    %v904 = vadd.f32 %v829, 1.0
    %v905 = vadd.f32 %v831, 1.0
    %v906 = vadd.f32 %v833, 1.0
    %v907 = vadd.f32 %v835, 1.0
    %v908 = vadd.f32 %v837, 1.0
    %v909 = vadd.f32 %v839, 1.0
    %v910 = vadd.f32 %v841, 1.0
    %v911 = vadd.f32 %v843, 1.0
    %v912 = vadd.f32 %v845, 1.0
    %v913 = vadd.f32 %v847, 1.0
    %v914 = vadd.f32 %v849, 1.0
    %v915 = vadd.f32 %v851, 1.0
    %v916 = vrcp.pop %v852
    %v917 = vrcp.pop %v853
    %v918 = vrcp.pop %v854
    %v919 = vrcp.pop %v855
    %v920 = vrcp.pop %v856
    %v921 = vrcp.pop %v857
    %v922 = vrcp.pop %v858
    %v923 = vrcp.pop %v859
    %v924 = vrcp.pop %v860
    %v925 = vrcp.pop %v861
    %v926 = vrcp.pop %v862
    %v927 = vrcp.pop %v863
    %v928 = vrcp.pop %v864
    %v929 = vrcp.pop %v865
    %v930 = vrcp.pop %v866
    %v931 = vrcp.pop %v867
    %v932 = vrcp.pop %v868
    %v933 = vrcp.pop %v869
    %v934 = vrcp.pop %v870
    %v935 = vrcp.pop %v871
    %v936 = vrcp.pop %v872
    %v937 = vrcp.pop %v873
    %v938 = vrcp.pop %v874
    %v939 = vrcp.pop %v875
    %v940 = vrcp.pop %v876
    %v941 = vrcp.pop %v877
    %v942 = vrcp.pop %v878
    %v943 = vrcp.pop %v879
    %v944 = vrcp.pop %v880
    %v945 = vrcp.pop %v881
    %v946 = vrcp.pop %v882
    %v947 = vrcp.pop %v883
    %v948 = vrcp.pop %v884
    %v949 = vrcp.pop %v885
    %v950 = vrcp.pop %v886
    %v951 = vrcp.pop %v887
    %v952 = vrcp.pop %v888
    %v953 = vrcp.pop %v889
    %v954 = vrcp.pop %v890
    %v955 = vrcp.pop %v891
    %v956 = vrcp.pop %v892
    %v957 = vrcp.pop %v893
    %v958 = vrcp.pop %v894
    %v959 = vrcp.pop %v895
    %v960 = vrcp.pop %v896
    %v961 = vrcp.pop %v897
    %v962 = vrcp.pop %v898
    %v963 = vrcp.pop %v899
    %v964 = vrcp.pop %v900
    %v965 = vrcp.pop %v901
    %v966 = vrcp.pop %v902
    %v967 = vrcp.pop %v903
    %v968 = vrcp.pop %v904
    %v969 = vrcp.pop %v905
    %v970 = vrcp.pop %v906
    %v971 = vrcp.pop %v907
    %v972 = vrcp.pop %v908
    %v973 = vrcp.pop %v909
    %v974 = vrcp.pop %v910
    %v975 = vrcp.pop %v911
    %v976 = vrcp.pop %v912
    %v977 = vrcp.pop %v913
    %v978 = vrcp.pop %v914
    %v979 = vrcp.pop %v915
    %v980 = vmul.f32 %v406, %v916
    %v981 = vmul.f32 %v409, %v917
    %v982 = vmul.f32 %v414, %v918
    %v983 = vmul.f32 %v417, %v919
    %v984 = vmul.f32 %v422, %v920
    %v985 = vmul.f32 %v425, %v921
    %v986 = vmul.f32 %v430, %v922
    %v987 = vmul.f32 %v433, %v923
    %v988 = vmul.f32 %v438, %v924
    %v989 = vmul.f32 %v441, %v925
    %v990 = vmul.f32 %v446, %v926
    %v991 = vmul.f32 %v449, %v927
    %v992 = vmul.f32 %v454, %v928
    %v993 = vmul.f32 %v457, %v929
    %v994 = vmul.f32 %v462, %v930
    %v995 = vmul.f32 %v465, %v931
    %v996 = vmul.f32 %v470, %v932
    %v997 = vmul.f32 %v473, %v933
    %v998 = vmul.f32 %v478, %v934
    %v999 = vmul.f32 %v481, %v935
    %v1000 = vmul.f32 %v486, %v936
    %v1001 = vmul.f32 %v489, %v937
    %v1002 = vmul.f32 %v494, %v938
    %v1003 = vmul.f32 %v497, %v939
    %v1004 = vmul.f32 %v502, %v940
    %v1005 = vmul.f32 %v505, %v941
    %v1006 = vmul.f32 %v510, %v942
    %v1007 = vmul.f32 %v513, %v943
    %v1008 = vmul.f32 %v518, %v944
    %v1009 = vmul.f32 %v521, %v945
    %v1010 = vmul.f32 %v526, %v946
    %v1011 = vmul.f32 %v529, %v947
    %v1012 = vmul.f32 %v534, %v948
    %v1013 = vmul.f32 %v537, %v949
    %v1014 = vmul.f32 %v542, %v950
    %v1015 = vmul.f32 %v545, %v951
    %v1016 = vmul.f32 %v550, %v952
    %v1017 = vmul.f32 %v553, %v953
    %v1018 = vmul.f32 %v558, %v954
    %v1019 = vmul.f32 %v561, %v955
    %v1020 = vmul.f32 %v566, %v956
    %v1021 = vmul.f32 %v569, %v957
    %v1022 = vmul.f32 %v574, %v958
    %v1023 = vmul.f32 %v577, %v959
    %v1024 = vmul.f32 %v582, %v960
    %v1025 = vmul.f32 %v585, %v961
    %v1026 = vmul.f32 %v590, %v962
    %v1027 = vmul.f32 %v593, %v963
    %v1028 = vmul.f32 %v598, %v964
    %v1029 = vmul.f32 %v601, %v965
    %v1030 = vmul.f32 %v606, %v966
    %v1031 = vmul.f32 %v609, %v967
    %v1032 = vmul.f32 %v614, %v968
    %v1033 = vmul.f32 %v617, %v969
    %v1034 = vmul.f32 %v622, %v970
    %v1035 = vmul.f32 %v625, %v971
    %v1036 = vmul.f32 %v630, %v972
    %v1037 = vmul.f32 %v633, %v973
    %v1038 = vmul.f32 %v638, %v974
    %v1039 = vmul.f32 %v641, %v975
    %v1040 = vmul.f32 %v646, %v976
    %v1041 = vmul.f32 %v649, %v977
    %v1042 = vmul.f32 %v654, %v978
    %v1043 = vmul.f32 %v657, %v979
    %1044 = vst [vmem:[#allocation7] sm:$0xff] %v980
    %1045 = vst [vmem:[#allocation7 + $0x8] sm:$0xff] %v981
    %1046 = vst [vmem:[#allocation7 + $0x10] sm:$0xff] %v982
    %1047 = vst [vmem:[#allocation7 + $0x18] sm:$0xff] %v983
    %1048 = vst [vmem:[#allocation7 + $0x20] sm:$0xff] %v984
    %1049 = vst [vmem:[#allocation7 + $0x28] sm:$0xff] %v985
    %1050 = vst [vmem:[#allocation7 + $0x30] sm:$0xff] %v986
    %1051 = vst [vmem:[#allocation7 + $0x38] sm:$0xff] %v987
    %1052 = vst [vmem:[#allocation7 + $0x40] sm:$0xff] %v988
    %1053 = vst [vmem:[#allocation7 + $0x48] sm:$0xff] %v989
    %1054 = vst [vmem:[#allocation7 + $0x50] sm:$0xff] %v990
    %1055 = vst [vmem:[#allocation7 + $0x58] sm:$0xff] %v991
    %1056 = vst [vmem:[#allocation7 + $0x60] sm:$0xff] %v992
    %1057 = vst [vmem:[#allocation7 + $0x68] sm:$0xff] %v993
    %1058 = vst [vmem:[#allocation7 + $0x70] sm:$0xff] %v994
    %1059 = vst [vmem:[#allocation7 + $0x78] sm:$0xff] %v995
    %1060 = vst [vmem:[#allocation7 + $0x80] sm:$0xff] %v996
    %1061 = vst [vmem:[#allocation7 + $0x88] sm:$0xff] %v997
    %1062 = vst [vmem:[#allocation7 + $0x90] sm:$0xff] %v998
    %1063 = vst [vmem:[#allocation7 + $0x98] sm:$0xff] %v999
    %1064 = vst [vmem:[#allocation7 + $0xa0] sm:$0xff] %v1000
    %1065 = vst [vmem:[#allocation7 + $0xa8] sm:$0xff] %v1001
    %1066 = vst [vmem:[#allocation7 + $0xb0] sm:$0xff] %v1002
    %1067 = vst [vmem:[#allocation7 + $0xb8] sm:$0xff] %v1003
    %1068 = vst [vmem:[#allocation7 + $0xc0] sm:$0xff] %v1004
    %1069 = vst [vmem:[#allocation7 + $0xc8] sm:$0xff] %v1005
    %1070 = vst [vmem:[#allocation7 + $0xd0] sm:$0xff] %v1006
    %1071 = vst [vmem:[#allocation7 + $0xd8] sm:$0xff] %v1007
    %1072 = vst [vmem:[#allocation7 + $0xe0] sm:$0xff] %v1008
    %1073 = vst [vmem:[#allocation7 + $0xe8] sm:$0xff] %v1009
    %1074 = vst [vmem:[#allocation7 + $0xf0] sm:$0xff] %v1010
    %1075 = vst [vmem:[#allocation7 + $0xf8] sm:$0xff] %v1011
    %1076 = vst [vmem:[#allocation7 + $0x100] sm:$0xff] %v1012
    %1077 = vst [vmem:[#allocation7 + $0x108] sm:$0xff] %v1013
    %1078 = vst [vmem:[#allocation7 + $0x110] sm:$0xff] %v1014
    %1079 = vst [vmem:[#allocation7 + $0x118] sm:$0xff] %v1015
    %1080 = vst [vmem:[#allocation7 + $0x120] sm:$0xff] %v1016
    %1081 = vst [vmem:[#allocation7 + $0x128] sm:$0xff] %v1017
    %1082 = vst [vmem:[#allocation7 + $0x130] sm:$0xff] %v1018
    %1083 = vst [vmem:[#allocation7 + $0x138] sm:$0xff] %v1019
    %1084 = vst [vmem:[#allocation7 + $0x140] sm:$0xff] %v1020
    %1085 = vst [vmem:[#allocation7 + $0x148] sm:$0xff] %v1021
    %1086 = vst [vmem:[#allocation7 + $0x150] sm:$0xff] %v1022
    %1087 = vst [vmem:[#allocation7 + $0x158] sm:$0xff] %v1023
    %1088 = vst [vmem:[#allocation7 + $0x160] sm:$0xff] %v1024
    %1089 = vst [vmem:[#allocation7 + $0x168] sm:$0xff] %v1025
    %1090 = vst [vmem:[#allocation7 + $0x170] sm:$0xff] %v1026
    %1091 = vst [vmem:[#allocation7 + $0x178] sm:$0xff] %v1027
    %1092 = vst [vmem:[#allocation7 + $0x180] sm:$0xff] %v1028
    %1093 = vst [vmem:[#allocation7 + $0x188] sm:$0xff] %v1029
    %1094 = vst [vmem:[#allocation7 + $0x190] sm:$0xff] %v1030
    %1095 = vst [vmem:[#allocation7 + $0x198] sm:$0xff] %v1031
    %1096 = vst [vmem:[#allocation7 + $0x1a0] sm:$0xff] %v1032
    %1097 = vst [vmem:[#allocation7 + $0x1a8] sm:$0xff] %v1033
    %1098 = vst [vmem:[#allocation7 + $0x1b0] sm:$0xff] %v1034
    %1099 = vst [vmem:[#allocation7 + $0x1b8] sm:$0xff] %v1035
    %1100 = vst [vmem:[#allocation7 + $0x1c0] sm:$0xff] %v1036
    %1101 = vst [vmem:[#allocation7 + $0x1c8] sm:$0xff] %v1037
    %1102 = vst [vmem:[#allocation7 + $0x1d0] sm:$0xff] %v1038
    %1103 = vst [vmem:[#allocation7 + $0x1d8] sm:$0xff] %v1039
    %1104 = vst [vmem:[#allocation7 + $0x1e0] sm:$0xff] %v1040
    %1105 = vst [vmem:[#allocation7 + $0x1e8] sm:$0xff] %v1041
    %1106 = vst [vmem:[#allocation7 + $0x1f0] sm:$0xff] %v1042
    %1107 = vst [vmem:[#allocation7 + $0x1f8] sm:$0xff] %v1043
    // Predicated region
    $region22: #{tpu_custom_call.1} parent=1 // pred_check
      _
    $region23: #{tpu_custom_call.1} parent=1 // pred_check_branch
      %1109 = sbr.rel (0) target = $region25
    $region24: #{tpu_custom_call.1} parent=1 // pred_region
      %s1111 = ssub.s32 8192, 8192
      %1112 = vsyncadd [#allocation4], %s1111
      %s1113 = sshll.u32 [#allocation7], 4
      %s1114 = int_to_ptr.vmem [resolvable:$true] %s1113
      %1119 = dma.vmem_to_hbm [thread:$0]  %s1114, 8192, %s3, [#allocation4], 128, 128, 8
    $region25: #{tpu_custom_call.1} parent=1 // pred_fallthru
      _
    // Predicated region
    $region26: #{tpu_custom_call.1} parent=1 // pred_check
      _
    $region27: #{tpu_custom_call.1} parent=1 // pred_check_branch
      %1121 = sbr.rel (0) target = $region29
    $region28: #{tpu_custom_call.1} parent=1 // pred_region
      %1122 = dma.done [#allocation4], 8192
    $region29: #{tpu_custom_call.1} parent=1 // pred_fallthru
      _
    %1123 = vsyncpa [#allocation3], 1
    %1124 = vsyncpa [#allocation6], 1
    %1125 = vsyncpa [#allocation4], 1

</llo_original>
